<compile_context>
chip_gen: v6e
topology: v6e:2x2x1
jax: 0.10.0
libtpu: 0.0.40
codegen_flags: <defaults>
</compile_context>

<pallas_src>
import functools

import jax
import jax.numpy as jnp
from jax.experimental import pallas as pl
from jax.experimental.pallas import tpu as pltpu

_LANES = 128
_PACK = 8 * _LANES  # 1024: padded H guarantees the sublane dim is a multiple of 8


def _conv1x1_interior_kernel(w_ref, off_ref, x_ref, o_ref):
    """Interior pixels of the padded 1x1 conv, plus (bias - sub[interior col]).

    w_ref:   (Cout, Cin)        f32, SMEM  -- 1x1 conv weights (scalars)
    off_ref: (Cout,)            f32, SMEM  -- bias[c] - sub[interior column]
    x_ref:   (Cin,  blk, 128)   f32, VMEM  -- dense (8,128)-tiled input slab
    o_ref:   (Cout, blk, 128)   f32, VMEM  -- dense (8,128)-tiled output slab
    """
    cin = x_ref.shape[0]
    cout = o_ref.shape[0]
    x = x_ref[...]                                   # (Cin, blk, 128)
    # Fully unrolled VPU FMAs -- no MXU round-trip for a 3x3 channel mix.
    for c in range(cout):
        acc = w_ref[c, 0] * x[0]
        for k in range(1, cin):
            acc = acc + w_ref[c, k] * x[k]
        # Each channel page is whole (8,128) vregs -> plain unmasked stores.
        o_ref[c] = acc + off_ref[c]


def _pick_row_block(rows, n_batch, max_rows=1024):
    """Largest multiple-of-8 row block dividing `rows`, capped at max_rows.

    When batch == 1, also guarantees >= 2 grid steps over rows (when possible)
    so v7x's second TensorCore is not idle.
    """
    def largest_divisor(cap):
        cap = max(8, (cap // 8) * 8)
        for b in range(cap, 7, -8):
            if rows % b == 0:
                return b
        return 8

    blk = largest_divisor(min(rows, max_rows))
    if n_batch == 1 and rows // blk < 2 and rows >= 16:
        blk = largest_divisor(rows // 2)
    return blk


def _interior_pallas(x3, w2d, off):
    """x3: (N, Cin, H) f32 -> (N, Cout, H) f32 interior conv + offset."""
    N, Cin, H = x3.shape
    Cout = w2d.shape[0]

    h_pad = -(-H // _PACK) * _PACK           # round H up to a multiple of 1024
    if h_pad != H:
        x3 = jnp.pad(x3, ((0, 0), (0, 0), (0, h_pad - H)))
    rows = h_pad // _LANES                   # multiple of 8 by construction
    x4 = x3.reshape(N, Cin, rows, _LANES)    # free row-major reshape: dense tiles

    blk = _pick_row_block(rows, N)
    grid = (N, rows // blk)

    out4 = pl.pallas_call(
        _conv1x1_interior_kernel,
        out_shape=jax.ShapeDtypeStruct((N, Cout, rows, _LANES), jnp.float32),
        grid_spec=pltpu.PrefetchScalarGridSpec(
            num_scalar_prefetch=0,
            grid=grid,
            in_specs=[
                pl.BlockSpec(memory_space=pltpu.MemorySpace.SMEM),   # weights
                pl.BlockSpec(memory_space=pltpu.MemorySpace.SMEM),   # offsets
                pl.BlockSpec((None, Cin, blk, _LANES),
                             lambda n, r: (n, 0, r, 0)),
            ],
            out_specs=pl.BlockSpec((None, Cout, blk, _LANES),
                                   lambda n, r: (n, 0, r, 0)),
        ),
        compiler_params=pltpu.CompilerParams(
            dimension_semantics=("parallel", "parallel"),
            vmem_limit_bytes=32 * 1024 * 1024,   # buffers ~6 MiB; safe on v5e/v6e/v7x
        ),
    )(w2d, off, x4)                               # (N, Cout, rows, 128)

    # Free reshape back, then slice off the H padding.
    return out4.reshape(N, Cout, h_pad)[:, :, :H]


def model_forward(x_nchw, weight, bias, sub_vec, *, use_pallas=None):
    """x_nchw: (N, 3, H, 1) f32 -> (N, 3, H+2, 3) f32 (NCHW)."""
    N, Cin, H, W = x_nchw.shape
    Cout = weight.shape[0]
    Ho, Wo = H + 2, W + 2  # padding=1 with a 1x1 kernel grows spatial dims by 2
    if W != 1 or sub_vec.shape[0] != Wo:
        raise ValueError(
            "broadcasting randn(3) over the last axis requires output "
            f"width == {sub_vec.shape[0]} (got {Wo}); same constraint as PyTorch")

    w2d = weight.reshape(Cout, Cin).astype(jnp.float32)
    bias = bias.astype(jnp.float32)
    sub_vec = sub_vec.astype(jnp.float32)

    # Tiny constant table: any output pixel that sees only zero padding equals
    # bias[c] - sub[j]; the interior column (j == 1) adds the same per-channel
    # offset on top of the channel mix.
    border = bias[:, None] - sub_vec[None, :]        # (Cout, Wo)
    off = border[:, 1]                               # (Cout,) interior offset

    # Free reshape (W == 1): NCHW -> (N, Cin, H).
    x3 = x_nchw.reshape(N, Cin, H).astype(jnp.float32)

    if use_pallas is None:
        # Launch + per-step pipeline overhead dominates for tiny problems.
        use_pallas = (N * H) >= 65536
    if use_pallas:
        interior = _interior_pallas(x3, w2d, off)                   # (N, Cout, H)
    else:
        interior = jnp.einsum("oc,nch->noh", w2d, x3) + off[None, :, None]

    # Single-pass composition of the full NCHW output (constant border columns
    # and rows fused into one stack + concatenate write; no broadcast+scatter).
    col0 = jnp.broadcast_to(border[:, 0][None, :, None], (N, Cout, H))
    col2 = jnp.broadcast_to(border[:, 2][None, :, None], (N, Cout, H))
    mid_rows = jnp.stack([col0, interior, col2], axis=-1)           # (N,Cout,H,3)
    border_row = jnp.broadcast_to(border[None, :, None, :], (N, Cout, 1, Wo))
    out = jnp.concatenate([border_row, mid_rows, border_row], axis=2)
    return out                                                      # (N,Cout,Ho,Wo)


if __name__ == "__main__":
    key = jax.random.PRNGKey(0)
    k_x, k_w, k_b, k_r = jax.random.split(key, 4)

    # Small shapes consistent with the module: Cin = Cout = 3 (fixed by the
    # conv); W = 1 so the output width is 3 and the randn(3) broadcast is valid.
    N, Cin, H, W = 2, 3, 16, 1
    Cout = 3

    x = jax.random.normal(k_x, (N, Cin, H, W), dtype=jnp.float32)
    # Deterministic parameter init matching Conv2d(3,3,1) shapes.
    fan_in = Cin * 1 * 1
    bound = 1.0 / (fan_in ** 0.5)
    weight = jax.random.uniform(k_w, (Cout, Cin, 1, 1), jnp.float32, -bound, bound)
    bias = jax.random.uniform(k_b, (Cout,), jnp.float32, -bound, bound)
    sub_vec = jax.random.normal(k_r, (3,), dtype=jnp.float32)  # torch.randn(3)

    # Force the Pallas path so the kernel itself is exercised at test shapes.
    fwd = jax.jit(functools.partial(model_forward, use_pallas=True))
    out = jax.block_until_ready(fwd(x, weight, bias, sub_vec))

    # Plain-JAX reference for correctness.
    x_pad = jnp.pad(x, ((0, 0), (0, 0), (1, 1), (1, 1)))
    ref = (jnp.einsum("nchw,oc->nohw", x_pad, weight.reshape(Cout, Cin))
           + bias[None, :, None, None]) - sub_vec   # broadcasts over last axis
    assert out.shape == (N, Cout, H + 2, W + 2)
    assert jnp.allclose(out, ref, atol=1e-5, rtol=1e-5)

    print("KERNEL_OK")
</pallas_src>

<mosaic_0001>
module attributes {stable_mosaic.version = 11 : i64} {
  func.func @_conv1x1_interior_kernel(%arg0: i32, %arg1: i32, %arg2: memref<3x3xf32, #tpu.memory_space<smem>>, %arg3: memref<3xf32, #tpu.memory_space<smem>>, %arg4: memref<1x3x8x128xf32, #tpu.memory_space<vmem>>, %arg5: memref<1x3x8x128xf32, #tpu.memory_space<vmem>>) attributes {dimension_semantics = [#tpu.dimension_semantics<parallel>, #tpu.dimension_semantics<parallel>], iteration_bounds = array<i64: 2, 1>, scalar_prefetch = 0 : i64, scratch_operands = 0 : i64, tpu.core_type = #tpu.core_type<tc>, window_params = [{transform_indices = @transform_0, window_bounds = array<i64: 3, 3>}, {transform_indices = @transform_1, window_bounds = array<i64: 3>}, {transform_indices = @transform_2, window_bounds = array<i64: 1, 3, 8, 128>}, {transform_indices = @transform_3, window_bounds = array<i64: 1, 3, 8, 128>}]} {
    %c0 = arith.constant 0 : index
    %c0_0 = arith.constant 0 : index
    %c0_1 = arith.constant 0 : index
    %c0_2 = arith.constant 0 : index
    %0 = vector.load %arg4[%c0, %c0_0, %c0_1, %c0_2] : memref<1x3x8x128xf32, #tpu.memory_space<vmem>>, vector<1x3x8x128xf32>
    %1 = vector.shape_cast %0 : vector<1x3x8x128xf32> to vector<3x8x128xf32>
    %c0_3 = arith.constant 0 : index
    %c0_4 = arith.constant 0 : index
    %2 = memref.load %arg2[%c0_3, %c0_4] : memref<3x3xf32, #tpu.memory_space<smem>>
    %3 = vector.extract_strided_slice %1 {offsets = [0, 0, 0], sizes = [1, 8, 128], strides = [1, 1, 1]} : vector<3x8x128xf32> to vector<1x8x128xf32>
    %4 = vector.shape_cast %3 : vector<1x8x128xf32> to vector<8x128xf32>
    %5 = vector.broadcast %2 : f32 to vector<8x128xf32>
    %6 = arith.mulf %5, %4 : vector<8x128xf32>
    %c0_5 = arith.constant 0 : index
    %c1 = arith.constant 1 : index
    %7 = memref.load %arg2[%c0_5, %c1] : memref<3x3xf32, #tpu.memory_space<smem>>
    %8 = vector.extract_strided_slice %1 {offsets = [1, 0, 0], sizes = [1, 8, 128], strides = [1, 1, 1]} : vector<3x8x128xf32> to vector<1x8x128xf32>
    %9 = vector.shape_cast %8 : vector<1x8x128xf32> to vector<8x128xf32>
    %10 = vector.broadcast %7 : f32 to vector<8x128xf32>
    %11 = arith.mulf %10, %9 : vector<8x128xf32>
    %12 = arith.addf %6, %11 : vector<8x128xf32>
    %c0_6 = arith.constant 0 : index
    %c2 = arith.constant 2 : index
    %13 = memref.load %arg2[%c0_6, %c2] : memref<3x3xf32, #tpu.memory_space<smem>>
    %14 = vector.extract_strided_slice %1 {offsets = [2, 0, 0], sizes = [1, 8, 128], strides = [1, 1, 1]} : vector<3x8x128xf32> to vector<1x8x128xf32>
    %15 = vector.shape_cast %14 : vector<1x8x128xf32> to vector<8x128xf32>
    %16 = vector.broadcast %13 : f32 to vector<8x128xf32>
    %17 = arith.mulf %16, %15 : vector<8x128xf32>
    %18 = arith.addf %12, %17 : vector<8x128xf32>
    %c0_7 = arith.constant 0 : index
    %19 = memref.load %arg3[%c0_7] : memref<3xf32, #tpu.memory_space<smem>>
    %20 = vector.broadcast %19 : f32 to vector<8x128xf32>
    %21 = arith.addf %18, %20 : vector<8x128xf32>
    %c0_8 = arith.constant 0 : index
    %c0_9 = arith.constant 0 : index
    %c0_10 = arith.constant 0 : index
    %c0_11 = arith.constant 0 : index
    %22 = vector.load %arg5[%c0_8, %c0_9, %c0_10, %c0_11] : memref<1x3x8x128xf32, #tpu.memory_space<vmem>>, vector<1x1x8x128xf32>
    %23 = vector.shape_cast %22 : vector<1x1x8x128xf32> to vector<8x128xf32>
    %24 = vector.shape_cast %21 : vector<8x128xf32> to vector<1x1x8x128xf32>
    tpu.vector_store %arg5[%c0_8, %c0_9, %c0_10, %c0_11], %24 {strides = array<i32>} : memref<1x3x8x128xf32, #tpu.memory_space<vmem>>, vector<1x1x8x128xf32>,
    %c1_12 = arith.constant 1 : index
    %c0_13 = arith.constant 0 : index
    %25 = memref.load %arg2[%c1_12, %c0_13] : memref<3x3xf32, #tpu.memory_space<smem>>
    %26 = vector.extract_strided_slice %1 {offsets = [0, 0, 0], sizes = [1, 8, 128], strides = [1, 1, 1]} : vector<3x8x128xf32> to vector<1x8x128xf32>
    %27 = vector.shape_cast %26 : vector<1x8x128xf32> to vector<8x128xf32>
    %28 = vector.broadcast %25 : f32 to vector<8x128xf32>
    %29 = arith.mulf %28, %27 : vector<8x128xf32>
    %c1_14 = arith.constant 1 : index
    %c1_15 = arith.constant 1 : index
    %30 = memref.load %arg2[%c1_14, %c1_15] : memref<3x3xf32, #tpu.memory_space<smem>>
    %31 = vector.extract_strided_slice %1 {offsets = [1, 0, 0], sizes = [1, 8, 128], strides = [1, 1, 1]} : vector<3x8x128xf32> to vector<1x8x128xf32>
    %32 = vector.shape_cast %31 : vector<1x8x128xf32> to vector<8x128xf32>
    %33 = vector.broadcast %30 : f32 to vector<8x128xf32>
    %34 = arith.mulf %33, %32 : vector<8x128xf32>
    %35 = arith.addf %29, %34 : vector<8x128xf32>
    %c1_16 = arith.constant 1 : index
    %c2_17 = arith.constant 2 : index
    %36 = memref.load %arg2[%c1_16, %c2_17] : memref<3x3xf32, #tpu.memory_space<smem>>
    %37 = vector.extract_strided_slice %1 {offsets = [2, 0, 0], sizes = [1, 8, 128], strides = [1, 1, 1]} : vector<3x8x128xf32> to vector<1x8x128xf32>
    %38 = vector.shape_cast %37 : vector<1x8x128xf32> to vector<8x128xf32>
    %39 = vector.broadcast %36 : f32 to vector<8x128xf32>
    %40 = arith.mulf %39, %38 : vector<8x128xf32>
    %41 = arith.addf %35, %40 : vector<8x128xf32>
    %c1_18 = arith.constant 1 : index
    %42 = memref.load %arg3[%c1_18] : memref<3xf32, #tpu.memory_space<smem>>
    %43 = vector.broadcast %42 : f32 to vector<8x128xf32>
    %44 = arith.addf %41, %43 : vector<8x128xf32>
    %c0_19 = arith.constant 0 : index
    %c1_20 = arith.constant 1 : index
    %c0_21 = arith.constant 0 : index
    %c0_22 = arith.constant 0 : index
    %45 = vector.load %arg5[%c0_19, %c1_20, %c0_21, %c0_22] : memref<1x3x8x128xf32, #tpu.memory_space<vmem>>, vector<1x1x8x128xf32>
    %46 = vector.shape_cast %45 : vector<1x1x8x128xf32> to vector<8x128xf32>
    %47 = vector.shape_cast %44 : vector<8x128xf32> to vector<1x1x8x128xf32>
    tpu.vector_store %arg5[%c0_19, %c1_20, %c0_21, %c0_22], %47 {strides = array<i32>} : memref<1x3x8x128xf32, #tpu.memory_space<vmem>>, vector<1x1x8x128xf32>,
    %c2_23 = arith.constant 2 : index
    %c0_24 = arith.constant 0 : index
    %48 = memref.load %arg2[%c2_23, %c0_24] : memref<3x3xf32, #tpu.memory_space<smem>>
    %49 = vector.extract_strided_slice %1 {offsets = [0, 0, 0], sizes = [1, 8, 128], strides = [1, 1, 1]} : vector<3x8x128xf32> to vector<1x8x128xf32>
    %50 = vector.shape_cast %49 : vector<1x8x128xf32> to vector<8x128xf32>
    %51 = vector.broadcast %48 : f32 to vector<8x128xf32>
    %52 = arith.mulf %51, %50 : vector<8x128xf32>
    %c2_25 = arith.constant 2 : index
    %c1_26 = arith.constant 1 : index
    %53 = memref.load %arg2[%c2_25, %c1_26] : memref<3x3xf32, #tpu.memory_space<smem>>
    %54 = vector.extract_strided_slice %1 {offsets = [1, 0, 0], sizes = [1, 8, 128], strides = [1, 1, 1]} : vector<3x8x128xf32> to vector<1x8x128xf32>
    %55 = vector.shape_cast %54 : vector<1x8x128xf32> to vector<8x128xf32>
    %56 = vector.broadcast %53 : f32 to vector<8x128xf32>
    %57 = arith.mulf %56, %55 : vector<8x128xf32>
    %58 = arith.addf %52, %57 : vector<8x128xf32>
    %c2_27 = arith.constant 2 : index
    %c2_28 = arith.constant 2 : index
    %59 = memref.load %arg2[%c2_27, %c2_28] : memref<3x3xf32, #tpu.memory_space<smem>>
    %60 = vector.extract_strided_slice %1 {offsets = [2, 0, 0], sizes = [1, 8, 128], strides = [1, 1, 1]} : vector<3x8x128xf32> to vector<1x8x128xf32>
    %61 = vector.shape_cast %60 : vector<1x8x128xf32> to vector<8x128xf32>
    %62 = vector.broadcast %59 : f32 to vector<8x128xf32>
    %63 = arith.mulf %62, %61 : vector<8x128xf32>
    %64 = arith.addf %58, %63 : vector<8x128xf32>
    %c2_29 = arith.constant 2 : index
    %65 = memref.load %arg3[%c2_29] : memref<3xf32, #tpu.memory_space<smem>>
    %66 = vector.broadcast %65 : f32 to vector<8x128xf32>
    %67 = arith.addf %64, %66 : vector<8x128xf32>
    %c0_30 = arith.constant 0 : index
    %c2_31 = arith.constant 2 : index
    %c0_32 = arith.constant 0 : index
    %c0_33 = arith.constant 0 : index
    %68 = vector.load %arg5[%c0_30, %c2_31, %c0_32, %c0_33] : memref<1x3x8x128xf32, #tpu.memory_space<vmem>>, vector<1x1x8x128xf32>
    %69 = vector.shape_cast %68 : vector<1x1x8x128xf32> to vector<8x128xf32>
    %70 = vector.shape_cast %67 : vector<8x128xf32> to vector<1x1x8x128xf32>
    tpu.vector_store %arg5[%c0_30, %c2_31, %c0_32, %c0_33], %70 {strides = array<i32>} : memref<1x3x8x128xf32, #tpu.memory_space<vmem>>, vector<1x1x8x128xf32>,
    return
  }
  func.func @transform_0(%arg0: i32, %arg1: i32) -> (i32, i32) {
    %c0_i32 = arith.constant 0 : i32
    %c0_i32_0 = arith.constant 0 : i32
    %c0_i32_1 = arith.constant 0 : i32
    return %c0_i32, %c0_i32_0 : i32, i32
  }
  func.func @transform_1(%arg0: i32, %arg1: i32) -> i32 {
    %c0_i32 = arith.constant 0 : i32
    %c0_i32_0 = arith.constant 0 : i32
    return %c0_i32 : i32
  }
  func.func @transform_2(%arg0: i32, %arg1: i32) -> (i32, i32, i32, i32) {
    %c0_i32 = arith.constant 0 : i32
    %c0_i32_0 = arith.constant 0 : i32
    %c0_i32_1 = arith.constant 0 : i32
    return %arg0, %c0_i32, %arg1, %c0_i32_0 : i32, i32, i32, i32
  }
  func.func @transform_3(%arg0: i32, %arg1: i32) -> (i32, i32, i32, i32) {
    %c0_i32 = arith.constant 0 : i32
    %c0_i32_0 = arith.constant 0 : i32
    %c0_i32_1 = arith.constant 0 : i32
    return %arg0, %c0_i32, %arg1, %c0_i32_0 : i32, i32, i32, i32
  }
}

</mosaic_0001>

<llo_original>
// kernel: model_forward.1
$region0: #{model_forward.1}
  #allocation0 [shape = 'u32[]', space=smem, size = 0x4, offset = 0x4, fixed_abs, tag = 'smem constant byte address 0x4 - core index']
  #allocation1 [shape = 'u32[144,128]{1,0:T(1,128)}', space=vmem, size = 0x12000, scoped, tag = 'internal scratch']
  %s0 = inlined_call_operand.vmem [shape: f32[3,3], index: 0, kind: input, shape index: {}]
  %s1 = inlined_call_operand.vmem [shape: f32[3], index: 1, kind: input, shape index: {}]
  %s2 = inlined_call_operand.vmem [shape: f32[2,3,8,128], index: 2, kind: input, shape index: {}]
  %s3 = inlined_call_operand.vmem [shape: f32[2,3,8,128], index: 3, kind: output, shape index: {}]
  %s4 = sld [smem:[#allocation0]]
  $region53: #{model_forward.1} parent=0
    _
  %s6 = ssub.s32 1, %s4
  %s7 = scalar_select 0, %s6, %s4
  $region1: #{model_forward.1} parent=0
    #allocation2 [shape = 'u8[2048]{0}', space=smem, size = 0x800, scoped, tag = 'input window, operand 0, single buffered']
    #allocation3 [shape = 's32[2]{0}', space=sflag, size = 0x8, scoped, tag = 'scoped memory for model_forward.1']
    #allocation4 [shape = 'u8[512]{0}', space=smem, size = 0x200, scoped, tag = 'input window, operand 1, single buffered']
    #allocation5 [shape = 's32[1]{0}', space=sflag, size = 0x4, scoped, tag = 'scoped memory for model_forward.1']
    %8 = vsyncpa [#allocation3], 0
    %9 = vsyncpa [#allocation5], 0
    loop: start=0, step=1, limit=4
    $region2: #{model_forward.1} parent=1 // loop_pre_header
      _
    $region3: #{model_forward.1} parent=1 // loop_header
      %s11 = sphi 0, %s15
      %p12 = scmp.ge.s32.totalorder %s11, 4
      %s18 = sphi 0, %s30
      %s19 = sphi 0, %s26
      %s20 = sphi 0, %s18
      %s21 = sphi 0, %s19
      %s22 = sphi 0, %s20
      %s23 = sphi 0, %s21
      %s31 = sphi 0, %s31
      %s33 = sphi 0, %s31
      %s34 = sphi 0, %s33
      %s48 = sphi 0, %s34
      %s52 = sphi 0, %s52
      %s54 = sphi 0, %s52
      %s55 = sphi 0, %s54
      %s69 = sphi 0, %s55
      %s77 = sphi 0, %s79
      %s80 = sphi 0, %s77
      %s81 = sphi 0, %s80
      %s97 = sphi 0, %s81
      %s105 = sphi 0, %s107
      %s108 = sphi 0, %s105
      %s109 = sphi 0, %s108
      %s125 = sphi 0, %s109
    $region4: #{model_forward.1} parent=1 // loop_header_branch
      %14 = sbr.rel (%p12) target = $region8
    $region5: #{model_forward.1} parent=1 // loop_body
      %s16 = ssub.s32 %s11, 1
      %s17 = ssub.s32 %s11, 2
      %s24 = sadd.s32 1, %s19
      %p25 = scmp.ge.s32.totalorder %s24, 1
      %s26 = scalar_select %p25, 0, %s24
      %s27 = sadd.s32 1, %s18
      %s28 = scalar_select %p25, %s27, %s18
      %p29 = scmp.ge.s32.totalorder %s28, 2
      %s30 = scalar_select %p29, 0, %s28
      %s32 = sadd.s32 %s31, 1
      %p35 = scmp.eq.s32.totalorder %s11, 1
      %p36 = scmp.ne.s32.totalorder %s31, %s33
      %p37 = scmp.eq.s32.totalorder %s11, 0
      %p38 = por %p36, %p37
      %p39 = scmp.ne.s32.totalorder %s31, %s33
      %p40 = scmp.eq.s32.totalorder %s16, 1
      %p41 = por %p39, %p40
      %p42 = scmp.ne.s32.totalorder %s33, %s34
      %p43 = scmp.eq.s32.totalorder %s16, 0
      %p44 = por %p42, %p43
      %p45 = scmp.ne.s32.totalorder %s33, %s34
      %p46 = scmp.eq.s32.totalorder %s17, 1
      %p47 = por %p45, %p46
      %p49 = scmp.ne.s32.totalorder %s34, %s48
      %p50 = scmp.eq.s32.totalorder %s17, 0
      %p51 = por %p49, %p50
      %s53 = sadd.s32 %s52, 1
      %p56 = scmp.eq.s32.totalorder %s11, 1
      %p57 = scmp.ne.s32.totalorder %s52, %s54
      %p58 = scmp.eq.s32.totalorder %s11, 0
      %p59 = por %p57, %p58
      %p60 = scmp.ne.s32.totalorder %s52, %s54
      %p61 = scmp.eq.s32.totalorder %s16, 1
      %p62 = por %p60, %p61
      %p63 = scmp.ne.s32.totalorder %s54, %s55
      %p64 = scmp.eq.s32.totalorder %s16, 0
      %p65 = por %p63, %p64
      %p66 = scmp.ne.s32.totalorder %s54, %s55
      %p67 = scmp.eq.s32.totalorder %s17, 1
      %p68 = por %p66, %p67
      %p70 = scmp.ne.s32.totalorder %s55, %s69
      %p71 = scmp.eq.s32.totalorder %s17, 0
      %p72 = por %p70, %p71
      %s73 = ssub.s32 %s18, %s30
      %s74 = ssub.s32 %s19, %s26
      %s75 = sor.u32 %s73, %s74
      %p76 = scmp.eq.s32.totalorder %s75, 0
      %s78 = sadd.s32 %s77, 1
      %s79 = scalar_select %p76, %s77, %s78
      %p82 = pneg %p76
      %p83 = scmp.eq.s32.totalorder %s11, 1
      %p84 = por %p82, %p83
      %p85 = scmp.ne.s32.totalorder %s77, %s80
      %p86 = scmp.eq.s32.totalorder %s11, 0
      %p87 = por %p85, %p86
      %p88 = scmp.ne.s32.totalorder %s77, %s80
      %p89 = scmp.eq.s32.totalorder %s16, 1
      %p90 = por %p88, %p89
      %p91 = scmp.ne.s32.totalorder %s80, %s81
      %p92 = scmp.eq.s32.totalorder %s16, 0
      %p93 = por %p91, %p92
      %p94 = scmp.ne.s32.totalorder %s80, %s81
      %p95 = scmp.eq.s32.totalorder %s17, 1
      %p96 = por %p94, %p95
      %p98 = scmp.ne.s32.totalorder %s81, %s97
      %p99 = scmp.eq.s32.totalorder %s17, 0
      %p100 = por %p98, %p99
      %s101 = ssub.s32 %s18, %s30
      %s102 = ssub.s32 %s19, %s26
      %s103 = sor.u32 %s101, %s102
      %p104 = scmp.eq.s32.totalorder %s103, 0
      %s106 = sadd.s32 %s105, 1
      %s107 = scalar_select %p104, %s105, %s106
      %p110 = pneg %p104
      %p111 = scmp.eq.s32.totalorder %s11, 1
      %p112 = por %p110, %p111
      %p113 = scmp.ne.s32.totalorder %s105, %s108
      %p114 = scmp.eq.s32.totalorder %s11, 0
      %p115 = por %p113, %p114
      %p116 = scmp.ne.s32.totalorder %s105, %s108
      %p117 = scmp.eq.s32.totalorder %s16, 1
      %p118 = por %p116, %p117
      %p119 = scmp.ne.s32.totalorder %s108, %s109
      %p120 = scmp.eq.s32.totalorder %s16, 0
      %p121 = por %p119, %p120
      %p122 = scmp.ne.s32.totalorder %s108, %s109
      %p123 = scmp.eq.s32.totalorder %s17, 1
      %p124 = por %p122, %p123
      %p126 = scmp.ne.s32.totalorder %s109, %s125
      %p127 = scmp.eq.s32.totalorder %s17, 0
      %p128 = por %p126, %p127
      %p129 = scmp.le.s32.totalorder 1, %s11
      %p130 = scmp.lt.s32.totalorder %s11, 3
      %p131 = pnand %p129, %p130
      %p132 = pneg %p131
      // Predicated region
      $region9: #{model_forward.1} parent=5 // pred_check
        _
      $region10: #{model_forward.1} parent=5 // pred_check_branch
        %134 = sbr.rel (%p131) target = $region12
      $region11: #{model_forward.1} parent=5 // pred_region
        %s135 = ssub.s32 %s11, 1
        // Predicated region
        $region13: #{model_forward.1} parent=11 // pred_check
          %p136 = pneg %p44
        $region14: #{model_forward.1} parent=11 // pred_check_branch
          %138 = sbr.rel (%p136) target = $region16
        $region15: #{model_forward.1} parent=11 // pred_region
          %s140 = ssub.s32 64, 64
          %141 = vsyncadd [#allocation3], %s140
          %s143 = sshll.u32 %s0, 4
          %s144 = int_to_ptr.vmem [resolvable:$true] %s143
          %146 = dma.vmem_to_smem %s144, 64, [#allocation2], [#allocation3]
        $region16: #{model_forward.1} parent=11 // pred_fallthru
          _
        // Predicated region
        $region17: #{model_forward.1} parent=11 // pred_check
          %p147 = pneg %p65
        $region18: #{model_forward.1} parent=11 // pred_check_branch
          %149 = sbr.rel (%p147) target = $region20
        $region19: #{model_forward.1} parent=11 // pred_region
          %s151 = ssub.s32 16, 16
          %152 = vsyncadd [#allocation5], %s151
          %s154 = sshll.u32 %s1, 4
          %s155 = int_to_ptr.vmem [resolvable:$true] %s154
          %157 = dma.vmem_to_smem %s155, 16, [#allocation4], [#allocation5]
        $region20: #{model_forward.1} parent=11 // pred_fallthru
          _
      $region12: #{model_forward.1} parent=5 // pred_fallthru
        _
      %p158 = scmp.lt.s32.totalorder %s11, 2
      // Predicated region
      $region21: #{model_forward.1} parent=5 // pred_check
        %p159 = pneg %p158
      $region22: #{model_forward.1} parent=5 // pred_check_branch
        %161 = sbr.rel (%p159) target = $region24
      $region23: #{model_forward.1} parent=5 // pred_region
        // Predicated region
        $region25: #{model_forward.1} parent=23 // pred_check
          %p162 = pneg %p87
        $region26: #{model_forward.1} parent=23 // pred_check_branch
          %164 = sbr.rel (%p162) target = $region28
        $region27: #{model_forward.1} parent=23 // pred_region
          %p165 = scmp.lt.s32.totalorder %s18, 1
          %s166 = scalar_select %p165, %s18, 1
          %p167 = scmp.lt.s32.totalorder %s19, 0
          %s168 = scalar_select %p167, %s19, 0
          %s169 = smul.addr %s166, 3
          %s170 = sadd.s32 %s168, %s169
          %s171 = smul.addr %s170, 8
          %s172 = scalar_lea.vmem %s2, %s171
        $region28: #{model_forward.1} parent=23 // pred_fallthru
          _
      $region24: #{model_forward.1} parent=5 // pred_fallthru
        _
      %p173 = scmp.le.s32.totalorder 1, %s11
      %p174 = scmp.lt.s32.totalorder %s11, 3
      %p175 = pnand %p173, %p174
      %p176 = pneg %p175
      // Predicated region
      $region29: #{model_forward.1} parent=5 // pred_check
        _
      $region30: #{model_forward.1} parent=5 // pred_check_branch
        %178 = sbr.rel (%p175) target = $region32
      $region31: #{model_forward.1} parent=5 // pred_region
        %s179 = ssub.s32 %s11, 1
        // Predicated region
        $region33: #{model_forward.1} parent=31 // pred_check
          %p180 = pneg %p44
        $region34: #{model_forward.1} parent=31 // pred_check_branch
          %182 = sbr.rel (%p180) target = $region36
        $region35: #{model_forward.1} parent=31 // pred_region
          %183 = dma.done [#allocation3], 64
        $region36: #{model_forward.1} parent=31 // pred_fallthru
          _
        // Predicated region
        $region37: #{model_forward.1} parent=31 // pred_check
          %p184 = pneg %p65
        $region38: #{model_forward.1} parent=31 // pred_check_branch
          %186 = sbr.rel (%p184) target = $region40
        $region39: #{model_forward.1} parent=31 // pred_region
          %187 = dma.done [#allocation5], 16
        $region40: #{model_forward.1} parent=31 // pred_fallthru
          _
        %188 = sfence
        %p189 = pneg %p44
        %p190 = pneg %p41
        %p191 = pneg %p65
        %p192 = pneg %p62
        %p193 = scmp.lt.s32.totalorder %s20, 1
        %s194 = scalar_select %p193, %s20, 1
        %p195 = scmp.lt.s32.totalorder %s21, 0
        %s196 = scalar_select %p195, %s21, 0
        %s197 = smul.addr %s194, 3
        %s198 = sadd.s32 %s196, %s197
        %s199 = smul.addr %s198, 8
        %s200 = scalar_lea.vmem %s2, %s199
        %p201 = pneg %p93
        %p202 = pneg %p90
        %p203 = pneg %p121
        %p204 = pneg %p118
        %p205 = scmp.lt.s32.totalorder %s20, 1
        %s206 = scalar_select %p205, %s20, 1
        %p207 = scmp.lt.s32.totalorder %s21, 0
        %s208 = scalar_select %p207, %s21, 0
        %s209 = smul.addr %s206, 3
        %s210 = sadd.s32 %s208, %s209
        %s211 = smul.addr %s210, 8
        %s212 = scalar_lea.vmem %s3, %s211
        %p213 = scmp.lt.s32.totalorder %s20, 1
        %s214 = scalar_select %p213, %s20, 1
        %p215 = scmp.lt.s32.totalorder %s21, 0
        %s216 = scalar_select %p215, %s21, 0
        %s217 = smul.addr %s214, 3
        %s218 = sadd.s32 %s216, %s217
        %s219 = smul.addr %s218, 8
        %s220 = scalar_lea.vmem %s2, %s219
        %p221 = scmp.lt.s32.totalorder %s20, 1
        %s222 = scalar_select %p221, %s20, 1
        %p223 = scmp.lt.s32.totalorder %s21, 0
        %s224 = scalar_select %p223, %s21, 0
        %s225 = smul.addr %s222, 3
        %s226 = sadd.s32 %s224, %s225
        %s227 = smul.addr %s226, 8
        %s228 = scalar_lea.vmem %s3, %s227
        %v229 = vld [vmem:[%s220] sm:$0xff]
        %v230 = vld [vmem:[%s220 + $0x8] sm:$0xff]
        %v231 = vld [vmem:[%s220 + $0x10] sm:$0xff]
        %s232 = sld [smem:[#allocation2]]
        %v233 = vstv %s232
        %v234 = vmul.f32 %v233, %v229
        %s235 = sld [smem:[#allocation2 + $0x1]]
        %v236 = vstv %s235
        %v237 = vmul.f32 %v236, %v230
        %v238 = vadd.f32 %v234, %v237
        %s239 = sld [smem:[#allocation2 + $0x2]]
        %v240 = vstv %s239
        %v241 = vmul.f32 %v240, %v231
        %v242 = vadd.f32 %v238, %v241
        %s243 = sld [smem:[#allocation4]]
        %v244 = vstv %s243
        %v245 = vadd.f32 %v242, %v244
        %246 = vst [vmem:[%s228] sm:$0xff] %v245
        %s247 = sld [smem:[#allocation2 + $0x80]]
        %v248 = vstv %s247
        %v249 = vmul.f32 %v248, %v229
        %s250 = sld [smem:[#allocation2 + $0x81]]
        %v251 = vstv %s250
        %v252 = vmul.f32 %v251, %v230
        %v253 = vadd.f32 %v249, %v252
        %s254 = sld [smem:[#allocation2 + $0x82]]
        %v255 = vstv %s254
        %v256 = vmul.f32 %v255, %v231
        %v257 = vadd.f32 %v253, %v256
        %s258 = sld [smem:[#allocation4 + $0x1]]
        %v259 = vstv %s258
        %v260 = vadd.f32 %v257, %v259
        %s261 = scalar_lea.vmem %s228, 8
        %262 = vst [vmem:[%s261] sm:$0xff] %v260
        %s263 = sld [smem:[#allocation2 + $0x100]]
        %v264 = vstv %s263
        %v265 = vmul.f32 %v264, %v229
        %s266 = sld [smem:[#allocation2 + $0x101]]
        %v267 = vstv %s266
        %v268 = vmul.f32 %v267, %v230
        %v269 = vadd.f32 %v265, %v268
        %s270 = sld [smem:[#allocation2 + $0x102]]
        %v271 = vstv %s270
        %v272 = vmul.f32 %v271, %v231
        %v273 = vadd.f32 %v269, %v272
        %s274 = sld [smem:[#allocation4 + $0x2]]
        %v275 = vstv %s274
        %v276 = vadd.f32 %v273, %v275
        %s277 = scalar_lea.vmem %s228, 16
        %278 = vst [vmem:[%s277] sm:$0xff] %v276
        %p279 = scmp.lt.s32.totalorder %s20, 1
        %s280 = scalar_select %p279, %s20, 1
        %p281 = scmp.lt.s32.totalorder %s21, 0
        %s282 = scalar_select %p281, %s21, 0
        %s283 = smul.addr %s280, 3
        %s284 = sadd.s32 %s282, %s283
        %s285 = smul.addr %s284, 8
        %s286 = scalar_lea.vmem %s3, %s285
        // Predicated region
        $region41: #{model_forward.1} parent=31 // pred_check
          %p287 = pneg %p118
        $region42: #{model_forward.1} parent=31 // pred_check_branch
          %289 = sbr.rel (%p287) target = $region44
        $region43: #{model_forward.1} parent=31 // pred_region
          _
        $region44: #{model_forward.1} parent=31 // pred_fallthru
          _
      $region32: #{model_forward.1} parent=5 // pred_fallthru
        _
      %p290 = scmp.le.s32.totalorder 2, %s11
      // Predicated region
      $region45: #{model_forward.1} parent=5 // pred_check
        %p291 = pneg %p290
      $region46: #{model_forward.1} parent=5 // pred_check_branch
        %293 = sbr.rel (%p291) target = $region48
      $region47: #{model_forward.1} parent=5 // pred_region
        %s294 = ssub.s32 %s11, 2
        // Predicated region
        $region49: #{model_forward.1} parent=47 // pred_check
          %p295 = pneg %p124
        $region50: #{model_forward.1} parent=47 // pred_check_branch
          %297 = sbr.rel (%p295) target = $region52
        $region51: #{model_forward.1} parent=47 // pred_region
          %p298 = scmp.lt.s32.totalorder %s22, 1
          %s299 = scalar_select %p298, %s22, 1
          %p300 = scmp.lt.s32.totalorder %s23, 0
          %s301 = scalar_select %p300, %s23, 0
          %s302 = smul.addr %s299, 3
          %s303 = sadd.s32 %s301, %s302
          %s304 = smul.addr %s303, 8
          %s305 = scalar_lea.vmem %s3, %s304
        $region52: #{model_forward.1} parent=47 // pred_fallthru
          _
      $region48: #{model_forward.1} parent=5 // pred_fallthru
        _
    $region6: #{model_forward.1} parent=1 // loop_footer
      %s15 = sadd.s32 1, %s11
    $region7: #{model_forward.1} parent=1 // loop_footer_branch
      %10 = sbr.rel target = $region3
    $region8: #{model_forward.1} parent=1 // loop_exit
      _
    %306 = vsyncpa [#allocation3], 1
    %s307 = scalar_lea.sflag [#allocation3], 1
    %308 = vsyncpa %s307, 1
    %309 = vsyncpa [#allocation5], 1

</llo_original>
